<compile_context>
chip_gen: v7x
topology: tpu7x:2x2x1
jax: 0.10.0
libtpu: 0.0.40
codegen_flags: <defaults>
</compile_context>

<pallas_src>
import functools

import jax
import jax.numpy as jnp
from jax import lax
from jax.experimental import pallas as pl
from jax.experimental.pallas import tpu as pltpu

EPS = 1e-5
_LANES = 128

# Row layout of the coalesced BN/bias parameter tile ([8, D] f32).
_ROW_G1, _ROW_BE1, _ROW_G2, _ROW_BE2, _ROW_B3 = 0, 1, 2, 3, 4


def _policy_kernel(x_ref, w_ref, p_ref, o_ref):
    """Fused Linear->BN->ReLU -> Linear->BN->ReLU -> Linear->Sigmoid.

    x_ref : f32  [B, D]      activations, feature dim zero-padded to D
    w_ref : bf16 [3, D, D]   stacked pre-padded Linear weights ([in, out] layout)
    p_ref : f32  [8, D]      rows: g1, be1, g2, be2, b3, pad, pad, pad
    o_ref : f32  [B, D]
    """
    x = x_ref[...]
    p = p_ref[...]

    def linear_bn_relu(h_in, w_bf16, g, be):
        # bf16 x bf16 -> f32 accumulation: single MXU pass per 128x128 tile.
        h = jnp.dot(h_in.astype(jnp.bfloat16), w_bf16,
                    preferred_element_type=jnp.float32)
        # Training-mode BatchNorm stats over the in-VMEM batch.  Two cheap
        # sublane reductions; the Linear bias is cancelled exactly by (-mu).
        mu = jnp.mean(h, axis=0, keepdims=True)
        ms = jnp.mean(h * h, axis=0, keepdims=True)
        var = jnp.maximum(ms - mu * mu, 0.0)            # biased batch variance
        scale = g * lax.rsqrt(var + EPS)                # EUP rsqrt
        shift = be - mu * scale
        return jnp.maximum(h * scale + shift, 0.0)      # folded BN + ReLU (f32)

    h = linear_bn_relu(x, w_ref[0],
                       p[_ROW_G1:_ROW_G1 + 1], p[_ROW_BE1:_ROW_BE1 + 1])
    h = linear_bn_relu(h, w_ref[1],
                       p[_ROW_G2:_ROW_G2 + 1], p[_ROW_BE2:_ROW_BE2 + 1])

    logits = jnp.dot(h.astype(jnp.bfloat16), w_ref[2],
                     preferred_element_type=jnp.float32) + p[_ROW_B3:_ROW_B3 + 1]
    # sigmoid(x) = 0.5 * tanh(x/2) + 0.5 : tanh runs on the EUP slot, no divide.
    o_ref[...] = (0.5 * jnp.tanh(0.5 * logits) + 0.5).astype(o_ref.dtype)


def _round_up(n, m=_LANES):
    return ((n + m - 1) // m) * m


@functools.partial(jax.jit, static_argnames=("n_out",))
def policy_forward(x, w_stack, bn_stack, *, n_out):
    """x: [B, n_in] f32.  w_stack: [3, D, D] bf16.  bn_stack: [8, D] f32."""
    B = x.shape[0]
    D = w_stack.shape[-1]

    # Only the activations are padded per call; all constant parameters were
    # pre-padded and pre-stacked once in init_params (layout plumbing only).
    x_pad = jnp.pad(x, ((0, 0), (0, D - x.shape[1])))

    def full_spec(shape):
        # Single grid point; full array resident in VMEM.
        return pl.BlockSpec(shape, lambda: (0,) * len(shape),
                            memory_space=pltpu.MemorySpace.VMEM)

    flops = 2 * B * D * D * 3
    transcendentals = 2 * D + B * D                 # rsqrt per feature + tanh per output
    in_bytes = x_pad.size * 4 + w_stack.size * 2 + bn_stack.size * 4
    out_bytes = B * D * 4
    bytes_accessed = in_bytes + out_bytes

    # VMEM budget derived from the actual resident buffers (x2 for Pallas
    # buffering) plus headroom for the f32 intermediates.
    vmem_limit = int(2 * (in_bytes + out_bytes) + 6 * B * D * 4 + (1 << 20))

    out = pl.pallas_call(
        _policy_kernel,
        grid=(),
        in_specs=[full_spec(x_pad.shape),
                  full_spec(w_stack.shape),
                  full_spec(bn_stack.shape)],
        out_specs=full_spec((B, D)),
        out_shape=jax.ShapeDtypeStruct((B, D), jnp.float32),
        compiler_params=pltpu.CompilerParams(vmem_limit_bytes=vmem_limit),
        cost_estimate=pl.CostEstimate(flops=flops,
                                      transcendentals=transcendentals,
                                      bytes_accessed=bytes_accessed),
    )(x_pad, w_stack, bn_stack)

    return out[:, :n_out]


def init_params(key, n_in, n1, n2, n_out):
    """Deterministic synthetic parameters (PyTorch-style uniform init).

    Linear weights are [in, out] (transpose of PyTorch's [out, in]), quantized
    to bfloat16, pre-padded to a common lane-dense width D and stacked into one
    [3, D, D] array (one DMA).  BN gamma/beta and b3 are pre-padded into one
    [8, D] f32 tile (one DMA).  Zero padding keeps padded lanes exactly zero
    through Linear+BN+ReLU.  b1/b2 exist only for the reference: training-mode
    BN cancels them exactly, so the kernel never reads them.
    """
    ks = jax.random.split(key, 6)

    def lin(kw, kb, fan_in, fan_out):
        bound = 1.0 / float(fan_in) ** 0.5
        w = jax.random.uniform(kw, (fan_in, fan_out), jnp.float32, -bound, bound)
        b = jax.random.uniform(kb, (1, fan_out), jnp.float32, -bound, bound)
        return w.astype(jnp.bfloat16), b

    w1, b1 = lin(ks[0], ks[1], n_in, n1)
    w2, b2 = lin(ks[2], ks[3], n1, n2)
    w3, b3 = lin(ks[4], ks[5], n2, n_out)
    g1 = jnp.ones((1, n1), jnp.float32); be1 = jnp.zeros((1, n1), jnp.float32)
    g2 = jnp.ones((1, n2), jnp.float32); be2 = jnp.zeros((1, n2), jnp.float32)

    D = max(_round_up(d) for d in (n_in, n1, n2, n_out))

    def pad_w(w):
        return jnp.pad(w, ((0, D - w.shape[0]), (0, D - w.shape[1])))

    def pad_row(v):
        return jnp.pad(v, ((0, 0), (0, D - v.shape[1])))[0]

    w_stack = jnp.stack([pad_w(w1), pad_w(w2), pad_w(w3)])              # [3, D, D] bf16
    zero_row = jnp.zeros((D,), jnp.float32)
    bn_stack = jnp.stack([pad_row(g1), pad_row(be1),
                          pad_row(g2), pad_row(be2),
                          pad_row(b3), zero_row, zero_row, zero_row])   # [8, D] f32

    return {
        "w_stack": w_stack, "bn_stack": bn_stack,
        # Unpadded copies kept for the pure-JAX reference only.
        "w1": w1, "b1": b1, "g1": g1, "be1": be1,
        "w2": w2, "b2": b2, "g2": g2, "be2": be2,
        "w3": w3, "b3": b3,
    }


def _reference(x, p):
    """Pure-JAX reference: full PyTorch training-mode forward (two-pass batch
    var, b1/b2 included — which BN cancels), using the same bf16 weights and
    bf16-cast activation feeds into each matmul as the kernel, with f32
    accumulation and f32 BN/activation math."""
    def dot_bf16(a, w_bf16):
        return jnp.dot(a.astype(jnp.bfloat16), w_bf16,
                       preferred_element_type=jnp.float32)

    h = dot_bf16(x, p["w1"]) + p["b1"]
    mu = h.mean(0, keepdims=True); var = ((h - mu) ** 2).mean(0, keepdims=True)
    h = jnp.maximum((h - mu) / jnp.sqrt(var + EPS) * p["g1"] + p["be1"], 0.0)
    h = dot_bf16(h, p["w2"]) + p["b2"]
    mu = h.mean(0, keepdims=True); var = ((h - mu) ** 2).mean(0, keepdims=True)
    h = jnp.maximum((h - mu) / jnp.sqrt(var + EPS) * p["g2"] + p["be2"], 0.0)
    return jax.nn.sigmoid(dot_bf16(h, p["w3"]) + p["b3"])


if __name__ == "__main__":
    B, n_in, n1, n2, n_out = 8, 32, 64, 32, 8

    key = jax.random.PRNGKey(0)
    kx, kp = jax.random.split(key)
    x = jax.random.normal(kx, (B, n_in), jnp.float32)
    params = init_params(kp, n_in, n1, n2, n_out)

    out = policy_forward(x, params["w_stack"], params["bn_stack"], n_out=n_out)
    out = jax.block_until_ready(out)

    ref = _reference(x, params)
    assert out.shape == (B, n_out)
    assert jnp.allclose(out, ref, atol=5e-3, rtol=5e-3), "mismatch vs JAX reference"

    print("KERNEL_OK")
</pallas_src>

<mosaic_0001>
module attributes {stable_mosaic.version = 11 : i64} {
  func.func @_policy_kernel(%arg0: memref<8x128xf32, #tpu.memory_space<vmem>>, %arg1: memref<3x128x128xbf16, #tpu.memory_space<vmem>>, %arg2: memref<8x128xf32, #tpu.memory_space<vmem>>, %arg3: memref<8x128xf32, #tpu.memory_space<vmem>>) attributes {dimension_semantics = [], scalar_prefetch = 0 : i64, scratch_operands = 0 : i64, tpu.core_type = #tpu.core_type<tc>} {
    %c0 = arith.constant 0 : index
    %c0_0 = arith.constant 0 : index
    %0 = vector.load %arg0[%c0, %c0_0] : memref<8x128xf32, #tpu.memory_space<vmem>>, vector<8x128xf32>
    %c0_1 = arith.constant 0 : index
    %c0_2 = arith.constant 0 : index
    %1 = vector.load %arg2[%c0_1, %c0_2] : memref<8x128xf32, #tpu.memory_space<vmem>>, vector<8x128xf32>
    %c0_3 = arith.constant 0 : index
    %c0_4 = arith.constant 0 : index
    %c0_5 = arith.constant 0 : index
    %2 = vector.load %arg1[%c0_3, %c0_4, %c0_5] : memref<3x128x128xbf16, #tpu.memory_space<vmem>>, vector<1x128x128xbf16>
    %3 = vector.shape_cast %2 : vector<1x128x128xbf16> to vector<128x128xbf16>
    %4 = vector.extract_strided_slice %1 {offsets = [0, 0], sizes = [1, 128], strides = [1, 1]} : vector<8x128xf32> to vector<1x128xf32>
    %5 = vector.extract_strided_slice %1 {offsets = [1, 0], sizes = [1, 128], strides = [1, 1]} : vector<8x128xf32> to vector<1x128xf32>
    %6 = arith.truncf %0 : vector<8x128xf32> to vector<8x128xbf16>
    %cst = arith.constant dense<0.000000e+00> : vector<8x128xf32>
    %7 = tpu.matmul %6, %3, %cst {dimension_numbers = #tpu.dot_dimension_numbers<[1], [0], [0], [1], [0, 0, 1, 1], [], []>} : vector<8x128xbf16>, vector<128x128xbf16>, vector<8x128xf32> -> vector<8x128xf32>
    %cst_6 = arith.constant dense<0.000000e+00> : vector<128xf32>
    %8 = vector.multi_reduction <add>, %7, %cst_6 [0] : vector<8x128xf32> to vector<128xf32>
    %9 = vector.shape_cast %8 : vector<128xf32> to vector<1x128xf32>
    %cst_7 = arith.constant 8.000000e+00 : f32
    %10 = vector.broadcast %cst_7 : f32 to vector<1x128xf32>
    %11 = arith.divf %9, %10 : vector<1x128xf32>
    %12 = arith.mulf %7, %7 : vector<8x128xf32>
    %cst_8 = arith.constant dense<0.000000e+00> : vector<128xf32>
    %13 = vector.multi_reduction <add>, %12, %cst_8 [0] : vector<8x128xf32> to vector<128xf32>
    %14 = vector.shape_cast %13 : vector<128xf32> to vector<1x128xf32>
    %cst_9 = arith.constant 8.000000e+00 : f32
    %15 = vector.broadcast %cst_9 : f32 to vector<1x128xf32>
    %16 = arith.divf %14, %15 : vector<1x128xf32>
    %17 = arith.mulf %11, %11 : vector<1x128xf32>
    %18 = arith.subf %16, %17 : vector<1x128xf32>
    %cst_10 = arith.constant 0.000000e+00 : f32
    %19 = vector.broadcast %cst_10 : f32 to vector<1x128xf32>
    %20 = arith.maximumf %18, %19 : vector<1x128xf32>
    %cst_11 = arith.constant 9.99999974E-6 : f32
    %21 = vector.broadcast %cst_11 : f32 to vector<1x128xf32>
    %22 = arith.addf %20, %21 : vector<1x128xf32>
    %23 = math.rsqrt %22 : vector<1x128xf32>
    %24 = arith.mulf %4, %23 : vector<1x128xf32>
    %25 = arith.mulf %11, %24 : vector<1x128xf32>
    %26 = arith.subf %5, %25 : vector<1x128xf32>
    %27 = vector.broadcast %24 : vector<1x128xf32> to vector<8x128xf32>
    %28 = arith.mulf %7, %27 : vector<8x128xf32>
    %29 = vector.broadcast %26 : vector<1x128xf32> to vector<8x128xf32>
    %30 = arith.addf %28, %29 : vector<8x128xf32>
    %cst_12 = arith.constant 0.000000e+00 : f32
    %31 = vector.broadcast %cst_12 : f32 to vector<8x128xf32>
    %32 = arith.maximumf %30, %31 : vector<8x128xf32>
    %c1 = arith.constant 1 : index
    %c0_13 = arith.constant 0 : index
    %c0_14 = arith.constant 0 : index
    %33 = vector.load %arg1[%c1, %c0_13, %c0_14] : memref<3x128x128xbf16, #tpu.memory_space<vmem>>, vector<1x128x128xbf16>
    %34 = vector.shape_cast %33 : vector<1x128x128xbf16> to vector<128x128xbf16>
    %35 = vector.extract_strided_slice %1 {offsets = [2, 0], sizes = [1, 128], strides = [1, 1]} : vector<8x128xf32> to vector<1x128xf32>
    %36 = vector.extract_strided_slice %1 {offsets = [3, 0], sizes = [1, 128], strides = [1, 1]} : vector<8x128xf32> to vector<1x128xf32>
    %37 = arith.truncf %32 : vector<8x128xf32> to vector<8x128xbf16>
    %cst_15 = arith.constant dense<0.000000e+00> : vector<8x128xf32>
    %38 = tpu.matmul %37, %34, %cst_15 {dimension_numbers = #tpu.dot_dimension_numbers<[1], [0], [0], [1], [0, 0, 1, 1], [], []>} : vector<8x128xbf16>, vector<128x128xbf16>, vector<8x128xf32> -> vector<8x128xf32>
    %cst_16 = arith.constant dense<0.000000e+00> : vector<128xf32>
    %39 = vector.multi_reduction <add>, %38, %cst_16 [0] : vector<8x128xf32> to vector<128xf32>
    %40 = vector.shape_cast %39 : vector<128xf32> to vector<1x128xf32>
    %cst_17 = arith.constant 8.000000e+00 : f32
    %41 = vector.broadcast %cst_17 : f32 to vector<1x128xf32>
    %42 = arith.divf %40, %41 : vector<1x128xf32>
    %43 = arith.mulf %38, %38 : vector<8x128xf32>
    %cst_18 = arith.constant dense<0.000000e+00> : vector<128xf32>
    %44 = vector.multi_reduction <add>, %43, %cst_18 [0] : vector<8x128xf32> to vector<128xf32>
    %45 = vector.shape_cast %44 : vector<128xf32> to vector<1x128xf32>
    %cst_19 = arith.constant 8.000000e+00 : f32
    %46 = vector.broadcast %cst_19 : f32 to vector<1x128xf32>
    %47 = arith.divf %45, %46 : vector<1x128xf32>
    %48 = arith.mulf %42, %42 : vector<1x128xf32>
    %49 = arith.subf %47, %48 : vector<1x128xf32>
    %cst_20 = arith.constant 0.000000e+00 : f32
    %50 = vector.broadcast %cst_20 : f32 to vector<1x128xf32>
    %51 = arith.maximumf %49, %50 : vector<1x128xf32>
    %cst_21 = arith.constant 9.99999974E-6 : f32
    %52 = vector.broadcast %cst_21 : f32 to vector<1x128xf32>
    %53 = arith.addf %51, %52 : vector<1x128xf32>
    %54 = math.rsqrt %53 : vector<1x128xf32>
    %55 = arith.mulf %35, %54 : vector<1x128xf32>
    %56 = arith.mulf %42, %55 : vector<1x128xf32>
    %57 = arith.subf %36, %56 : vector<1x128xf32>
    %58 = vector.broadcast %55 : vector<1x128xf32> to vector<8x128xf32>
    %59 = arith.mulf %38, %58 : vector<8x128xf32>
    %60 = vector.broadcast %57 : vector<1x128xf32> to vector<8x128xf32>
    %61 = arith.addf %59, %60 : vector<8x128xf32>
    %cst_22 = arith.constant 0.000000e+00 : f32
    %62 = vector.broadcast %cst_22 : f32 to vector<8x128xf32>
    %63 = arith.maximumf %61, %62 : vector<8x128xf32>
    %64 = arith.truncf %63 : vector<8x128xf32> to vector<8x128xbf16>
    %c2 = arith.constant 2 : index
    %c0_23 = arith.constant 0 : index
    %c0_24 = arith.constant 0 : index
    %65 = vector.load %arg1[%c2, %c0_23, %c0_24] : memref<3x128x128xbf16, #tpu.memory_space<vmem>>, vector<1x128x128xbf16>
    %66 = vector.shape_cast %65 : vector<1x128x128xbf16> to vector<128x128xbf16>
    %cst_25 = arith.constant dense<0.000000e+00> : vector<8x128xf32>
    %67 = tpu.matmul %64, %66, %cst_25 {dimension_numbers = #tpu.dot_dimension_numbers<[1], [0], [0], [1], [0, 0, 1, 1], [], []>} : vector<8x128xbf16>, vector<128x128xbf16>, vector<8x128xf32> -> vector<8x128xf32>
    %68 = vector.extract_strided_slice %1 {offsets = [4, 0], sizes = [1, 128], strides = [1, 1]} : vector<8x128xf32> to vector<1x128xf32>
    %69 = vector.broadcast %68 : vector<1x128xf32> to vector<8x128xf32>
    %70 = arith.addf %67, %69 : vector<8x128xf32>
    %cst_26 = arith.constant 5.000000e-01 : f32
    %71 = vector.broadcast %cst_26 : f32 to vector<8x128xf32>
    %72 = arith.mulf %71, %70 : vector<8x128xf32>
    %73 = math.tanh %72 : vector<8x128xf32>
    %cst_27 = arith.constant 5.000000e-01 : f32
    %74 = vector.broadcast %cst_27 : f32 to vector<8x128xf32>
    %75 = arith.mulf %74, %73 : vector<8x128xf32>
    %cst_28 = arith.constant 5.000000e-01 : f32
    %76 = vector.broadcast %cst_28 : f32 to vector<8x128xf32>
    %77 = arith.addf %75, %76 : vector<8x128xf32>
    %c0_29 = arith.constant 0 : index
    %c0_30 = arith.constant 0 : index
    %78 = vector.load %arg3[%c0_29, %c0_30] : memref<8x128xf32, #tpu.memory_space<vmem>>, vector<8x128xf32>
    tpu.vector_store %arg3[%c0_29, %c0_30], %77 {strides = array<i32>} : memref<8x128xf32, #tpu.memory_space<vmem>>, vector<8x128xf32>,
    return
  }
}

</mosaic_0001>

<llo_original>
// kernel: policy_forward.1
$region0: #{policy_forward.1}
  #allocation0 [shape = 'u32[]', space=smem, size = 0x4, offset = 0x4, fixed_abs, tag = 'smem constant byte address 0x4 - core index']
  #allocation1 [shape = 'u32[144,128]{1,0:T(1,128)}', space=vmem, size = 0x12000, scoped, tag = 'internal scratch']
  %s0 = inlined_call_operand.vmem [shape: f32[8,128], index: 0, kind: input, shape index: {}]
  %s1 = inlined_call_operand.hbm [shape: bf16[3,128,128], index: 1, kind: input, shape index: {}]
  %s2 = inlined_call_operand.vmem [shape: f32[8,128], index: 2, kind: input, shape index: {}]
  %s3 = inlined_call_operand.hbm [shape: f32[8,128], index: 3, kind: output, shape index: {}]
  %s4 = sld [smem:[#allocation0]]
  $region26: #{policy_forward.1} parent=0
    _
  %s6 = ssub.s32 1, %s4
  %s7 = scalar_select 0, %s6, %s4
  $region1: #{policy_forward.1} parent=0
    #allocation2 [shape = 'u8[98304]{0}', space=vmem, size = 0x18000, scoped, tag = 'input window, operand 1, single buffered']
    #allocation3 [shape = 's32[1]{0}', space=sflag, size = 0x4, scoped, tag = 'scoped memory for policy_forward.1']
    #allocation4 [shape = 's32[1]{0}', space=sflag, size = 0x4, scoped, tag = 'scoped memory for policy_forward.1']
    #allocation5 [shape = 'u8[4096]{0}', space=vmem, size = 0x1000, scoped, tag = 'output window, operand 0, single buffered']
    %8 = vsyncpa [#allocation3], 0
    %9 = vsyncpa [#allocation4], 0
    // Predicated region
    $region2: #{policy_forward.1} parent=1 // pred_check
      _
    $region3: #{policy_forward.1} parent=1 // pred_check_branch
      %11 = sbr.rel (0) target = $region5
    $region4: #{policy_forward.1} parent=1 // pred_region
      _
    $region5: #{policy_forward.1} parent=1 // pred_fallthru
      _
    // Predicated region
    $region6: #{policy_forward.1} parent=1 // pred_check
      _
    $region7: #{policy_forward.1} parent=1 // pred_check_branch
      %13 = sbr.rel (0) target = $region9
    $region8: #{policy_forward.1} parent=1 // pred_region
      %s15 = ssub.s32 3072, 3072
      %16 = vsyncadd [#allocation3], %s15
      %s17 = sshll.u32 [#allocation2], 4
      %s18 = int_to_ptr.vmem [resolvable:$true] %s17
      %23 = dma.hbm_to_vmem [thread:$0]  %s1, 3072, %s18, [#allocation3], 64, 64, 4
    $region9: #{policy_forward.1} parent=1 // pred_fallthru
      _
    // Predicated region
    $region10: #{policy_forward.1} parent=1 // pred_check
      _
    $region11: #{policy_forward.1} parent=1 // pred_check_branch
      %25 = sbr.rel (0) target = $region13
    $region12: #{policy_forward.1} parent=1 // pred_region
      _
    $region13: #{policy_forward.1} parent=1 // pred_fallthru
      _
    // Predicated region
    $region14: #{policy_forward.1} parent=1 // pred_check
      _
    $region15: #{policy_forward.1} parent=1 // pred_check_branch
      %27 = sbr.rel (0) target = $region17
    $region16: #{policy_forward.1} parent=1 // pred_region
      %28 = dma.done [#allocation3], 3072
    $region17: #{policy_forward.1} parent=1 // pred_fallthru
      _
    %v30 = vld [vmem:[%s0] sm:$0xff]
    %v31 = vld [vmem:[%s2] sm:$0xff]
    %v32 = vld [vmem:[#allocation2] sm:$0xf]
    %v33 = vld [vmem:[#allocation2 + $0x4] sm:$0xf]
    %v34 = vld [vmem:[#allocation2 + $0x8] sm:$0xf]
    %v35 = vld [vmem:[#allocation2 + $0xc] sm:$0xf]
    %v36 = vld [vmem:[#allocation2 + $0x10] sm:$0xf]
    %v37 = vld [vmem:[#allocation2 + $0x14] sm:$0xf]
    %v38 = vld [vmem:[#allocation2 + $0x18] sm:$0xf]
    %v39 = vld [vmem:[#allocation2 + $0x1c] sm:$0xf]
    %v40 = vld [vmem:[#allocation2 + $0x20] sm:$0xf]
    %v41 = vld [vmem:[#allocation2 + $0x24] sm:$0xf]
    %v42 = vld [vmem:[#allocation2 + $0x28] sm:$0xf]
    %v43 = vld [vmem:[#allocation2 + $0x2c] sm:$0xf]
    %v44 = vld [vmem:[#allocation2 + $0x30] sm:$0xf]
    %v45 = vld [vmem:[#allocation2 + $0x34] sm:$0xf]
    %v46 = vld [vmem:[#allocation2 + $0x38] sm:$0xf]
    %v47 = vld [vmem:[#allocation2 + $0x3c] sm:$0xf]
    %v48 = vpack.c.bf16 %v30, %v30
    %v65 = vunpack.c.l.b16 %v32
    %v66 = vunpack.c.l.b16 %v33
    %v67 = vunpack.c.l.b16 %v34
    %v68 = vunpack.c.l.b16 %v35
    %v69 = vunpack.c.l.b16 %v36
    %v70 = vunpack.c.l.b16 %v37
    %v71 = vunpack.c.l.b16 %v38
    %v72 = vunpack.c.l.b16 %v39
    %v73 = vunpack.c.l.b16 %v40
    %v74 = vunpack.c.l.b16 %v41
    %v75 = vunpack.c.l.b16 %v42
    %v76 = vunpack.c.l.b16 %v43
    %v77 = vunpack.c.l.b16 %v44
    %v78 = vunpack.c.l.b16 %v45
    %v79 = vunpack.c.l.b16 %v46
    %v80 = vunpack.c.l.b16 %v47
    %v81 = vpack.c.b16 %v66, %v65
    %v82 = vpack.c.b16 %v68, %v67
    %v83 = vpack.c.b16 %v70, %v69
    %v84 = vpack.c.b16 %v72, %v71
    %v85 = vpack.c.b16 %v74, %v73
    %v86 = vpack.c.b16 %v76, %v75
    %v87 = vpack.c.b16 %v78, %v77
    %v88 = vpack.c.b16 %v80, %v79
    %97 = vmatprep.subr.bf16.mxu0 0
    %98 = vmatpush1.bf16.msra.mxu0 %v81
    %99 = vmatprep.subr.bf16.mxu0 0
    %100 = vmatpush1.bf16.msra.mxu0 %v82
    %101 = vmatprep.subr.bf16.mxu0 0
    %102 = vmatpush1.bf16.msra.mxu0 %v83
    %103 = vmatprep.subr.bf16.mxu0 0
    %104 = vmatpush1.bf16.msra.mxu0 %v84
    %105 = vmatprep.subr.bf16.mxu0 0
    %106 = vmatpush1.bf16.msra.mxu0 %v85
    %107 = vmatprep.subr.bf16.mxu0 0
    %108 = vmatpush1.bf16.msra.mxu0 %v86
    %109 = vmatprep.subr.bf16.mxu0 0
    %110 = vmatpush1.bf16.msra.mxu0 %v87
    %111 = vmatprep.subr.bf16.mxu0 0
    %112 = vmatpush1.bf16.msra.mxu0 %v88
    %113 = vmatprep.subr.bf16.mxu0 0
    %114 = vmatpush1.bf16.msra.mxu0 0
    %115 = vmatprep.subr.bf16.mxu0 0
    %116 = vmatpush1.bf16.msra.mxu0 0
    %117 = vmatprep.subr.bf16.mxu0 0
    %118 = vmatpush1.bf16.msra.mxu0 0
    %119 = vmatprep.subr.bf16.mxu0 0
    %120 = vmatpush1.bf16.msra.mxu0 0
    %121 = vmatprep.subr.bf16.mxu0 0
    %122 = vmatpush1.bf16.msra.mxu0 0
    %123 = vmatprep.subr.bf16.mxu0 0
    %124 = vmatpush1.bf16.msra.mxu0 0
    %125 = vmatprep.subr.bf16.mxu0 0
    %126 = vmatpush1.bf16.msra.mxu0 0
    %127 = vmatprep.subr.bf16.mxu0 0
    %128 = vmatpush1.bf16.msra.mxu0 0
    %129 = vmatprep.mubr.bf16.mxu0 0
    %130 = vmatmul.mubr.bf16.gmra.mrb[0].mxu0 %v48
    %v131 = vpop.f32.mrb[0].mxu0
    %v132 = vadd.f32 0.0, %v131
    %v133 = vpop.f32.mrb[0].mxu0
    %v134 = vpop.f32.mrb[0].mxu0
    %v135 = vpop.f32.mrb[0].mxu0
    %136 = vdwg.mxu0
    %v137 = vrot.slane %v132, 4
    %v138 = vadd.f32 %v132, %v137
    %v139 = vrot.slane %v138, 2
    %v140 = vadd.f32 %v138, %v139
    %v141 = vrot.slane %v140, 1
    %v142 = vadd.f32 %v140, %v141
    %v143 = vrcp.pop 8.0
    %v144 = vmul.f32 %v142, %v143
    %v145 = vmul.f32 %v132, %v132
    %v146 = vrot.slane %v145, 4
    %v147 = vadd.f32 %v145, %v146
    %v148 = vrot.slane %v147, 2
    %v149 = vadd.f32 %v147, %v148
    %v150 = vrot.slane %v149, 1
    %v151 = vadd.f32 %v149, %v150
    %v152 = vmul.f32 %v151, %v143
    %v153 = vmul.f32 %v144, %v144
    %v154 = vsub.f32 %v152, %v153
    %v155 = vmax.f32 %v154, 0.0
    %v156 = vadd.f32 %v155, 1e-05
    %v157 = vrsqrt.pop %v156
    %v158 = vmul.f32 %v31, %v157
    %v159 = vmul.f32 %v144, %v158
    %v161 = vrot.slane %v159, 7
    %v163 = vsub.f32 %v31, %v161
    %v164 = vlaneseq
    %v165 = vshrl.u32 %v164, 7
    %v166 = vsub.s32 0, %v165
    %v167 = vrot.slane %v158, %v166
    %v168 = vmul.f32 %v132, %v167
    %v169 = vlaneseq
    %v170 = vshrl.u32 %v169, 7
    %v171 = vsub.s32 1, %v170
    %v172 = vrot.slane %v163, %v171
    %v173 = vadd.f32 %v168, %v172
    %v174 = vmax.f32 %v173, 0.0
    %s175 = scalar_lea.vmem [#allocation2], 64
    %v176 = vld [vmem:[%s175] sm:$0xf]
    %v177 = vld [vmem:[%s175 + $0x4] sm:$0xf]
    %v178 = vld [vmem:[%s175 + $0x8] sm:$0xf]
    %v179 = vld [vmem:[%s175 + $0xc] sm:$0xf]
    %v180 = vld [vmem:[%s175 + $0x10] sm:$0xf]
    %v181 = vld [vmem:[%s175 + $0x14] sm:$0xf]
    %v182 = vld [vmem:[%s175 + $0x18] sm:$0xf]
    %v183 = vld [vmem:[%s175 + $0x1c] sm:$0xf]
    %v184 = vld [vmem:[%s175 + $0x20] sm:$0xf]
    %v185 = vld [vmem:[%s175 + $0x24] sm:$0xf]
    %v186 = vld [vmem:[%s175 + $0x28] sm:$0xf]
    %v187 = vld [vmem:[%s175 + $0x2c] sm:$0xf]
    %v188 = vld [vmem:[%s175 + $0x30] sm:$0xf]
    %v189 = vld [vmem:[%s175 + $0x34] sm:$0xf]
    %v190 = vld [vmem:[%s175 + $0x38] sm:$0xf]
    %v191 = vld [vmem:[%s175 + $0x3c] sm:$0xf]
    %v192 = vpack.c.bf16 %v174, %v174
    %v209 = vunpack.c.l.b16 %v176
    %v210 = vunpack.c.l.b16 %v177
    %v211 = vunpack.c.l.b16 %v178
    %v212 = vunpack.c.l.b16 %v179
    %v213 = vunpack.c.l.b16 %v180
    %v214 = vunpack.c.l.b16 %v181
    %v215 = vunpack.c.l.b16 %v182
    %v216 = vunpack.c.l.b16 %v183
    %v217 = vunpack.c.l.b16 %v184
    %v218 = vunpack.c.l.b16 %v185
    %v219 = vunpack.c.l.b16 %v186
    %v220 = vunpack.c.l.b16 %v187
    %v221 = vunpack.c.l.b16 %v188
    %v222 = vunpack.c.l.b16 %v189
    %v223 = vunpack.c.l.b16 %v190
    %v224 = vunpack.c.l.b16 %v191
    %v225 = vpack.c.b16 %v210, %v209
    %v226 = vpack.c.b16 %v212, %v211
    %v227 = vpack.c.b16 %v214, %v213
    %v228 = vpack.c.b16 %v216, %v215
    %v229 = vpack.c.b16 %v218, %v217
    %v230 = vpack.c.b16 %v220, %v219
    %v231 = vpack.c.b16 %v222, %v221
    %v232 = vpack.c.b16 %v224, %v223
    %241 = vmatprep.subr.bf16.mxu0 0
    %242 = vmatpush1.bf16.msra.mxu0 %v225
    %243 = vmatprep.subr.bf16.mxu0 0
    %244 = vmatpush1.bf16.msra.mxu0 %v226
    %245 = vmatprep.subr.bf16.mxu0 0
    %246 = vmatpush1.bf16.msra.mxu0 %v227
    %247 = vmatprep.subr.bf16.mxu0 0
    %248 = vmatpush1.bf16.msra.mxu0 %v228
    %249 = vmatprep.subr.bf16.mxu0 0
    %250 = vmatpush1.bf16.msra.mxu0 %v229
    %251 = vmatprep.subr.bf16.mxu0 0
    %252 = vmatpush1.bf16.msra.mxu0 %v230
    %253 = vmatprep.subr.bf16.mxu0 0
    %254 = vmatpush1.bf16.msra.mxu0 %v231
    %255 = vmatprep.subr.bf16.mxu0 0
    %256 = vmatpush1.bf16.msra.mxu0 %v232
    %257 = vmatprep.subr.bf16.mxu0 0
    %258 = vmatpush1.bf16.msra.mxu0 0
    %259 = vmatprep.subr.bf16.mxu0 0
    %260 = vmatpush1.bf16.msra.mxu0 0
    %261 = vmatprep.subr.bf16.mxu0 0
    %262 = vmatpush1.bf16.msra.mxu0 0
    %263 = vmatprep.subr.bf16.mxu0 0
    %264 = vmatpush1.bf16.msra.mxu0 0
    %265 = vmatprep.subr.bf16.mxu0 0
    %266 = vmatpush1.bf16.msra.mxu0 0
    %267 = vmatprep.subr.bf16.mxu0 0
    %268 = vmatpush1.bf16.msra.mxu0 0
    %269 = vmatprep.subr.bf16.mxu0 0
    %270 = vmatpush1.bf16.msra.mxu0 0
    %271 = vmatprep.subr.bf16.mxu0 0
    %272 = vmatpush1.bf16.msra.mxu0 0
    %273 = vmatprep.mubr.bf16.mxu0 0
    %274 = vmatmul.mubr.bf16.gmra.mrb[0].mxu0 %v192
    %v275 = vpop.f32.mrb[0].mxu0
    %v276 = vadd.f32 0.0, %v275
    %v277 = vpop.f32.mrb[0].mxu0
    %v278 = vpop.f32.mrb[0].mxu0
    %v279 = vpop.f32.mrb[0].mxu0
    %280 = vdwg.mxu0
    %v281 = vrot.slane %v276, 4
    %v282 = vadd.f32 %v276, %v281
    %v283 = vrot.slane %v282, 2
    %v284 = vadd.f32 %v282, %v283
    %v285 = vrot.slane %v284, 1
    %v286 = vadd.f32 %v284, %v285
    %v287 = vmul.f32 %v286, %v143
    %v288 = vmul.f32 %v276, %v276
    %v289 = vrot.slane %v288, 4
    %v290 = vadd.f32 %v288, %v289
    %v291 = vrot.slane %v290, 2
    %v292 = vadd.f32 %v290, %v291
    %v293 = vrot.slane %v292, 1
    %v294 = vadd.f32 %v292, %v293
    %v295 = vmul.f32 %v294, %v143
    %v296 = vmul.f32 %v287, %v287
    %v297 = vsub.f32 %v295, %v296
    %v298 = vmax.f32 %v297, 0.0
    %v299 = vadd.f32 %v298, 1e-05
    %v300 = vrsqrt.pop %v299
    %v301 = vmul.f32 %v31, %v300
    %v302 = vmul.f32 %v287, %v301
    %v304 = vrot.slane %v302, 7
    %v306 = vsub.f32 %v31, %v304
    %v307 = vlaneseq
    %v308 = vshrl.u32 %v307, 7
    %v309 = vsub.s32 2, %v308
    %v310 = vrot.slane %v301, %v309
    %v311 = vmul.f32 %v276, %v310
    %v312 = vlaneseq
    %v313 = vshrl.u32 %v312, 7
    %v314 = vsub.s32 3, %v313
    %v315 = vrot.slane %v306, %v314
    %v316 = vadd.f32 %v311, %v315
    %v317 = vmax.f32 %v316, 0.0
    %v318 = vpack.c.bf16 %v317, %v317
    %s319 = scalar_lea.vmem [#allocation2], 128
    %v320 = vld [vmem:[%s319] sm:$0xf]
    %v321 = vld [vmem:[%s319 + $0x4] sm:$0xf]
    %v322 = vld [vmem:[%s319 + $0x8] sm:$0xf]
    %v323 = vld [vmem:[%s319 + $0xc] sm:$0xf]
    %v324 = vld [vmem:[%s319 + $0x10] sm:$0xf]
    %v325 = vld [vmem:[%s319 + $0x14] sm:$0xf]
    %v326 = vld [vmem:[%s319 + $0x18] sm:$0xf]
    %v327 = vld [vmem:[%s319 + $0x1c] sm:$0xf]
    %v328 = vld [vmem:[%s319 + $0x20] sm:$0xf]
    %v329 = vld [vmem:[%s319 + $0x24] sm:$0xf]
    %v330 = vld [vmem:[%s319 + $0x28] sm:$0xf]
    %v331 = vld [vmem:[%s319 + $0x2c] sm:$0xf]
    %v332 = vld [vmem:[%s319 + $0x30] sm:$0xf]
    %v333 = vld [vmem:[%s319 + $0x34] sm:$0xf]
    %v334 = vld [vmem:[%s319 + $0x38] sm:$0xf]
    %v335 = vld [vmem:[%s319 + $0x3c] sm:$0xf]
    %v336 = vlaneseq
    %v337 = vshrl.u32 %v336, 7
    %v338 = vsub.s32 4, %v337
    %v339 = vrot.slane %v31, %v338
    %v356 = vunpack.c.l.b16 %v320
    %v357 = vunpack.c.l.b16 %v321
    %v358 = vunpack.c.l.b16 %v322
    %v359 = vunpack.c.l.b16 %v323
    %v360 = vunpack.c.l.b16 %v324
    %v361 = vunpack.c.l.b16 %v325
    %v362 = vunpack.c.l.b16 %v326
    %v363 = vunpack.c.l.b16 %v327
    %v364 = vunpack.c.l.b16 %v328
    %v365 = vunpack.c.l.b16 %v329
    %v366 = vunpack.c.l.b16 %v330
    %v367 = vunpack.c.l.b16 %v331
    %v368 = vunpack.c.l.b16 %v332
    %v369 = vunpack.c.l.b16 %v333
    %v370 = vunpack.c.l.b16 %v334
    %v371 = vunpack.c.l.b16 %v335
    %v372 = vpack.c.b16 %v357, %v356
    %v373 = vpack.c.b16 %v359, %v358
    %v374 = vpack.c.b16 %v361, %v360
    %v375 = vpack.c.b16 %v363, %v362
    %v376 = vpack.c.b16 %v365, %v364
    %v377 = vpack.c.b16 %v367, %v366
    %v378 = vpack.c.b16 %v369, %v368
    %v379 = vpack.c.b16 %v371, %v370
    %388 = vmatprep.subr.bf16.mxu0 0
    %389 = vmatpush1.bf16.msra.mxu0 %v372
    %390 = vmatprep.subr.bf16.mxu0 0
    %391 = vmatpush1.bf16.msra.mxu0 %v373
    %392 = vmatprep.subr.bf16.mxu0 0
    %393 = vmatpush1.bf16.msra.mxu0 %v374
    %394 = vmatprep.subr.bf16.mxu0 0
    %395 = vmatpush1.bf16.msra.mxu0 %v375
    %396 = vmatprep.subr.bf16.mxu0 0
    %397 = vmatpush1.bf16.msra.mxu0 %v376
    %398 = vmatprep.subr.bf16.mxu0 0
    %399 = vmatpush1.bf16.msra.mxu0 %v377
    %400 = vmatprep.subr.bf16.mxu0 0
    %401 = vmatpush1.bf16.msra.mxu0 %v378
    %402 = vmatprep.subr.bf16.mxu0 0
    %403 = vmatpush1.bf16.msra.mxu0 %v379
    %404 = vmatprep.subr.bf16.mxu0 0
    %405 = vmatpush1.bf16.msra.mxu0 0
    %406 = vmatprep.subr.bf16.mxu0 0
    %407 = vmatpush1.bf16.msra.mxu0 0
    %408 = vmatprep.subr.bf16.mxu0 0
    %409 = vmatpush1.bf16.msra.mxu0 0
    %410 = vmatprep.subr.bf16.mxu0 0
    %411 = vmatpush1.bf16.msra.mxu0 0
    %412 = vmatprep.subr.bf16.mxu0 0
    %413 = vmatpush1.bf16.msra.mxu0 0
    %414 = vmatprep.subr.bf16.mxu0 0
    %415 = vmatpush1.bf16.msra.mxu0 0
    %416 = vmatprep.subr.bf16.mxu0 0
    %417 = vmatpush1.bf16.msra.mxu0 0
    %418 = vmatprep.subr.bf16.mxu0 0
    %419 = vmatpush1.bf16.msra.mxu0 0
    %420 = vmatprep.mubr.bf16.mxu0 0
    %421 = vmatmul.mubr.bf16.gmra.mrb[0].mxu0 %v318
    %v422 = vpop.f32.mrb[0].mxu0
    %v423 = vadd.f32 %v339, %v422
    %v424 = vpop.f32.mrb[0].mxu0
    %v425 = vpop.f32.mrb[0].mxu0
    %v426 = vpop.f32.mrb[0].mxu0
    %427 = vdwg.mxu0
    %v428 = vmul.f32 %v423, 0.5
    %v429 = vtanh.pop %v428
    %v430 = vmul.f32 %v429, 0.5
    %v431 = vadd.f32 %v430, 0.5
    %432 = vst [vmem:[#allocation5] sm:$0xff] %v431
    // Predicated region
    $region18: #{policy_forward.1} parent=1 // pred_check
      _
    $region19: #{policy_forward.1} parent=1 // pred_check_branch
      %434 = sbr.rel (0) target = $region21
    $region20: #{policy_forward.1} parent=1 // pred_region
      %s436 = ssub.s32 128, 128
      %437 = vsyncadd [#allocation4], %s436
      %s439 = sshll.u32 [#allocation5], 4
      %s440 = int_to_ptr.vmem [resolvable:$true] %s439
      %442 = dma.vmem_to_hbm [thread:$0]  %s440, 128, %s3, [#allocation4]
    $region21: #{policy_forward.1} parent=1 // pred_fallthru
      _
    // Predicated region
    $region22: #{policy_forward.1} parent=1 // pred_check
      _
    $region23: #{policy_forward.1} parent=1 // pred_check_branch
      %444 = sbr.rel (0) target = $region25
    $region24: #{policy_forward.1} parent=1 // pred_region
      %445 = dma.done [#allocation4], 128
    $region25: #{policy_forward.1} parent=1 // pred_fallthru
      _
    %446 = vsyncpa [#allocation3], 1
    %447 = vsyncpa [#allocation4], 1

</llo_original>
